<compile_context>
chip_gen: v7x
topology: tpu7x:2x2x1
jax: 0.10.0
libtpu: 0.0.40
codegen_flags: <defaults>
</compile_context>

<pallas_src>
import functools

import jax
import jax.numpy as jnp
from jax.experimental import pallas as pl
from jax.experimental.pallas import tpu as pltpu


def _channel_attention_kernel(x_ref, w1_ref, w2_ref, o_ref, sum_acc, max_acc,
                              *, inv_hw):
    # x_ref: (C, TILE_HW)   w1_ref: (C//r, C)   w2_ref: (C, C//r)
    # o_ref: (1, C)         sum_acc / max_acc: (C, 1) f32 scratch
    s = pl.program_id(1)

    @pl.when(s == 0)
    def _init():
        sum_acc[...] = jnp.zeros_like(sum_acc)
        max_acc[...] = jnp.full_like(max_acc, -jnp.inf)   # max needs -inf init

    x = x_ref[...].astype(jnp.float32)                    # (C, TILE_HW)
    sum_acc[...] += jnp.sum(x, axis=1, keepdims=True)     # lane-axis reduce
    max_acc[...] = jnp.maximum(max_acc[...],
                               jnp.max(x, axis=1, keepdims=True))

    @pl.when(s == pl.num_programs(1) - 1)
    def _finalize():
        avg = sum_acc[...] * inv_hw                       # (C, 1), true-HW mean
        mx = max_acc[...]                                 # (C, 1)
        c = avg.shape[0]

        # Fuse avg & max into one (C, 2) operand via broadcasted select
        # (avoids a minor-dim concatenate): col 0 = avg, col 1 = max.
        lane = jax.lax.broadcasted_iota(jnp.int32, (c, 2), 1)
        v = jnp.where(lane == 0, avg, mx)                 # (C, 2)

        w1 = w1_ref[...]                                  # (C//r, C), f32
        w2 = w2_ref[...]                                  # (C, C//r), f32
        h = jnp.maximum(
            jnp.dot(w1, v, preferred_element_type=jnp.float32), 0.0)   # (C//r, 2)
        o = jnp.dot(w2, h, preferred_element_type=jnp.float32)         # (C, 2)
        y_col = jax.nn.sigmoid(o[:, 0:1] + o[:, 1:2])                  # (C, 1)

        # Lane-dense (1, C) store: move channels from sublanes to lanes using a
        # diagonal select + sublane reduce (cheap, runs once per batch, avoids
        # an awkward small transpose).
        rows = jax.lax.broadcasted_iota(jnp.int32, (c, c), 0)
        cols = jax.lax.broadcasted_iota(jnp.int32, (c, c), 1)
        y_row = jnp.sum(jnp.where(rows == cols, y_col, 0.0),
                        axis=0, keepdims=True)                         # (1, C)
        o_ref[...] = y_row.astype(o_ref.dtype)


def _pick_tile_hw(hw, c, itemsize, cap_bytes=2 * 1024 * 1024, max_tile=8192):
    """Largest spatial tile that divides HW, is a multiple of 128 (lane rule),
    and keeps one (C, TILE) buffer within a couple of MiB (double-buffer safe
    on v7x's smaller VMEM)."""
    if hw % 128 != 0:
        # Last block dim must be a multiple of 128 or the full extent.
        return hw
    cap = max(128, (cap_bytes // max(1, c * itemsize)) // 128 * 128)
    cap = min(cap, max_tile)
    if hw <= cap:
        return hw
    best = 128
    t = 256
    while t <= cap:
        if hw % t == 0:
            best = t
        t += 128
    return best


def channel_attention(x, w1, w2, *, tile_hw=None):
    """x: (B, C, H, W) NCHW; w1: (C//r, C); w2: (C, C//r). Returns (B, C, 1, 1)."""
    B, C, H, W = x.shape
    HW = H * W
    hidden = w1.shape[0]

    if tile_hw is None:
        tile_hw = _pick_tile_hw(HW, C, jnp.dtype(x.dtype).itemsize)
    assert HW % tile_hw == 0, (HW, tile_hw)
    n_tiles = HW // tile_hw

    x_flat = x.reshape(B, C, HW)
    # Pre-cast weights once in the wrapper; the kernel reads them as-is.
    w1 = w1.astype(jnp.float32)
    w2 = w2.astype(jnp.float32)

    kernel = functools.partial(_channel_attention_kernel, inv_hw=1.0 / HW)

    out = pl.pallas_call(
        kernel,
        out_shape=jax.ShapeDtypeStruct((B, 1, C), x.dtype),
        grid_spec=pltpu.PrefetchScalarGridSpec(
            num_scalar_prefetch=0,
            grid=(B, n_tiles),
            in_specs=[
                pl.BlockSpec((pl.Squeezed(), C, tile_hw),
                             lambda b, s: (b, 0, s)),
                pl.BlockSpec((hidden, C), lambda b, s: (0, 0)),
                pl.BlockSpec((C, hidden), lambda b, s: (0, 0)),
            ],
            out_specs=pl.BlockSpec((pl.Squeezed(), 1, C),
                                   lambda b, s: (b, 0, 0)),
            scratch_shapes=[
                pltpu.VMEM((C, 1), jnp.float32),   # running sum
                pltpu.VMEM((C, 1), jnp.float32),   # running max
            ],
        ),
        compiler_params=pltpu.CompilerParams(
            dimension_semantics=("parallel", "arbitrary"),
        ),
    )(x_flat, w1, w2)

    return out.reshape(B, C, 1, 1)


def channel_attention_ref(x, w1, w2):
    """Pure-JAX reference matching the PyTorch forward."""
    avg = jnp.mean(x, axis=(2, 3), keepdims=True)   # (B,C,1,1)
    mx = jnp.max(x, axis=(2, 3), keepdims=True)     # (B,C,1,1)

    def mlp(v):  # v: (B,C,1,1)
        v = v[:, :, 0, 0]                            # (B,C)
        h = jnp.maximum(v @ w1.T, 0.0)               # (B,C//r)
        o = h @ w2.T                                 # (B,C)
        return o[:, :, None, None]

    return jax.nn.sigmoid(mlp(avg) + mlp(mx))


if __name__ == "__main__":
    # Module config: channel must be divisible by ratio (default 16).
    B, C, H, W = 2, 32, 16, 16
    ratio = 16
    hidden = C // ratio

    key = jax.random.PRNGKey(0)
    kx, k1, k2 = jax.random.split(key, 3)

    x = jax.random.normal(kx, (B, C, H, W), dtype=jnp.float32)
    # Conv2d(C, C//r, 1, bias=False) weight (C//r, C, 1, 1) -> (C//r, C)
    w1 = jax.random.normal(k1, (hidden, C), dtype=jnp.float32) * 0.1
    # Conv2d(C//r, C, 1, bias=False) weight (C, C//r, 1, 1) -> (C, C//r)
    w2 = jax.random.normal(k2, (C, hidden), dtype=jnp.float32) * 0.1

    ref = channel_attention_ref(x, w1, w2)

    # Multi-tile path: exercises the spatial-reduction grid axis and the
    # init/accumulate/finalize scratch logic across steps.
    out_tiled = jax.block_until_ready(channel_attention(x, w1, w2, tile_hw=128))
    # Auto-picked tile path (full-extent tile at this small spatial size).
    out_auto = jax.block_until_ready(channel_attention(x, w1, w2))

    for out in (out_tiled, out_auto):
        assert out.shape == (B, C, 1, 1), out.shape
        assert jnp.allclose(out, ref, atol=1e-5, rtol=1e-5), (
            float(jnp.max(jnp.abs(out - ref)))
        )
    print("KERNEL_OK")
</pallas_src>

<mosaic_0001>
module attributes {stable_mosaic.version = 11 : i64} {
  func.func @_channel_attention_kernel(%arg0: i32, %arg1: i32, %arg2: memref<1x32x128xf32, #tpu.memory_space<vmem>>, %arg3: memref<2x32xf32, #tpu.memory_space<vmem>>, %arg4: memref<32x2xf32, #tpu.memory_space<vmem>>, %arg5: memref<1x1x32xf32, #tpu.memory_space<vmem>>, %arg6: memref<32x1xf32, #tpu.memory_space<vmem>>, %arg7: memref<32x1xf32, #tpu.memory_space<vmem>>) attributes {dimension_semantics = [#tpu.dimension_semantics<parallel>, #tpu.dimension_semantics<arbitrary>], iteration_bounds = array<i64: 2, 2>, scalar_prefetch = 0 : i64, scratch_operands = 2 : i64, tpu.core_type = #tpu.core_type<tc>, window_params = [{transform_indices = @transform_0, window_bounds = array<i64: 1, 32, 128>}, {pipeline_mode = #tpu.pipeline_mode<synchronous>, transform_indices = @transform_1, window_bounds = array<i64: 2, 32>}, {pipeline_mode = #tpu.pipeline_mode<synchronous>, transform_indices = @transform_2, window_bounds = array<i64: 32, 2>}, {transform_indices = @transform_3, window_bounds = array<i64: 1, 1, 32>}]} {
    %c0_i32 = arith.constant 0 : i32
    %0 = arith.cmpi eq, %arg1, %c0_i32 : i32
    %1 = arith.extui %0 : i1 to i32
    %c0_i32_0 = arith.constant 0 : i32
    %2 = arith.cmpi ne, %1, %c0_i32_0 : i32
    scf.if %2 {
      %cst_13 = arith.constant 0.000000e+00 : f32
      %18 = vector.broadcast %cst_13 : f32 to vector<32x1xf32>
      %c0_14 = arith.constant 0 : index
      %c0_15 = arith.constant 0 : index
      %19 = vector.load %arg6[%c0_14, %c0_15] : memref<32x1xf32, #tpu.memory_space<vmem>>, vector<32x1xf32>
      tpu.vector_store %arg6[%c0_14, %c0_15], %18 {strides = array<i32>} : memref<32x1xf32, #tpu.memory_space<vmem>>, vector<32x1xf32>,
      %cst_16 = arith.constant 0xFF800000 : f32
      %20 = vector.broadcast %cst_16 : f32 to vector<32x1xf32>
      %c0_17 = arith.constant 0 : index
      %c0_18 = arith.constant 0 : index
      %21 = vector.load %arg7[%c0_17, %c0_18] : memref<32x1xf32, #tpu.memory_space<vmem>>, vector<32x1xf32>
      tpu.vector_store %arg7[%c0_17, %c0_18], %20 {strides = array<i32>} : memref<32x1xf32, #tpu.memory_space<vmem>>, vector<32x1xf32>,
    } else {
    }
    %c0 = arith.constant 0 : index
    %c0_1 = arith.constant 0 : index
    %c0_2 = arith.constant 0 : index
    %3 = vector.load %arg2[%c0, %c0_1, %c0_2] : memref<1x32x128xf32, #tpu.memory_space<vmem>>, vector<1x32x128xf32>
    %4 = vector.shape_cast %3 : vector<1x32x128xf32> to vector<32x128xf32>
    %c0_3 = arith.constant 0 : index
    %c0_4 = arith.constant 0 : index
    %5 = vector.load %arg6[%c0_3, %c0_4] : memref<32x1xf32, #tpu.memory_space<vmem>>, vector<32x1xf32>
    %cst = arith.constant dense<0.000000e+00> : vector<32xf32>
    %6 = vector.multi_reduction <add>, %4, %cst [1] : vector<32x128xf32> to vector<32xf32>
    %7 = vector.shape_cast %6 : vector<32xf32> to vector<32x1xf32>
    %8 = arith.addf %5, %7 : vector<32x1xf32>
    %c0_5 = arith.constant 0 : index
    %c0_6 = arith.constant 0 : index
    %9 = vector.load %arg6[%c0_5, %c0_6] : memref<32x1xf32, #tpu.memory_space<vmem>>, vector<32x1xf32>
    tpu.vector_store %arg6[%c0_5, %c0_6], %8 {strides = array<i32>} : memref<32x1xf32, #tpu.memory_space<vmem>>, vector<32x1xf32>,
    %c0_7 = arith.constant 0 : index
    %c0_8 = arith.constant 0 : index
    %10 = vector.load %arg7[%c0_7, %c0_8] : memref<32x1xf32, #tpu.memory_space<vmem>>, vector<32x1xf32>
    %cst_9 = arith.constant dense<0xFF800000> : vector<32xf32>
    %11 = vector.multi_reduction <maximumf>, %4, %cst_9 [1] : vector<32x128xf32> to vector<32xf32>
    %12 = vector.shape_cast %11 : vector<32xf32> to vector<32x1xf32>
    %13 = arith.maximumf %10, %12 : vector<32x1xf32>
    %c0_10 = arith.constant 0 : index
    %c0_11 = arith.constant 0 : index
    %14 = vector.load %arg7[%c0_10, %c0_11] : memref<32x1xf32, #tpu.memory_space<vmem>>, vector<32x1xf32>
    tpu.vector_store %arg7[%c0_10, %c0_11], %13 {strides = array<i32>} : memref<32x1xf32, #tpu.memory_space<vmem>>, vector<32x1xf32>,
    %c1_i32 = arith.constant 1 : i32
    %15 = arith.cmpi eq, %arg1, %c1_i32 : i32
    %16 = arith.extui %15 : i1 to i32
    %c0_i32_12 = arith.constant 0 : i32
    %17 = arith.cmpi ne, %16, %c0_i32_12 : i32
    scf.if %17 {
      %c0_13 = arith.constant 0 : index
      %c0_14 = arith.constant 0 : index
      %18 = vector.load %arg6[%c0_13, %c0_14] : memref<32x1xf32, #tpu.memory_space<vmem>>, vector<32x1xf32>
      %cst_15 = arith.constant 3.906250e-03 : f32
      %19 = vector.broadcast %cst_15 : f32 to vector<32x1xf32>
      %20 = arith.mulf %18, %19 : vector<32x1xf32>
      %c0_16 = arith.constant 0 : index
      %c0_17 = arith.constant 0 : index
      %21 = vector.load %arg7[%c0_16, %c0_17] : memref<32x1xf32, #tpu.memory_space<vmem>>, vector<32x1xf32>
      %22 = tpu.iota {dimensions = array<i32: 1>} : vector<32x2xi32>
      %c0_i32_18 = arith.constant 0 : i32
      %23 = vector.broadcast %c0_i32_18 : i32 to vector<32x2xi32>
      %24 = arith.cmpi eq, %22, %23 : vector<32x2xi32>
      %25 = vector.shape_cast %20 : vector<32x1xf32> to vector<32x1xf32>
      %26 = vector.broadcast %25 : vector<32x1xf32> to vector<32x2xf32>
      %27 = vector.shape_cast %21 : vector<32x1xf32> to vector<32x1xf32>
      %28 = vector.broadcast %27 : vector<32x1xf32> to vector<32x2xf32>
      %29 = arith.select %24, %26, %28 : vector<32x2xi1>, vector<32x2xf32>
      %c0_19 = arith.constant 0 : index
      %c0_20 = arith.constant 0 : index
      %30 = vector.load %arg3[%c0_19, %c0_20] : memref<2x32xf32, #tpu.memory_space<vmem>>, vector<2x32xf32>
      %c0_21 = arith.constant 0 : index
      %c0_22 = arith.constant 0 : index
      %31 = vector.load %arg4[%c0_21, %c0_22] : memref<32x2xf32, #tpu.memory_space<vmem>>, vector<32x2xf32>
      %cst_23 = arith.constant dense<0.000000e+00> : vector<2x2xf32>
      %32 = tpu.matmul %30, %29, %cst_23 {dimension_numbers = #tpu.dot_dimension_numbers<[1], [0], [0], [1], [0, 0, 1, 1], [], []>} : vector<2x32xf32>, vector<32x2xf32>, vector<2x2xf32> -> vector<2x2xf32>
      %cst_24 = arith.constant 0.000000e+00 : f32
      %33 = vector.broadcast %cst_24 : f32 to vector<2x2xf32>
      %34 = arith.maximumf %32, %33 : vector<2x2xf32>
      %cst_25 = arith.constant dense<0.000000e+00> : vector<32x2xf32>
      %35 = tpu.matmul %31, %34, %cst_25 {dimension_numbers = #tpu.dot_dimension_numbers<[1], [0], [0], [1], [0, 0, 1, 1], [], []>} : vector<32x2xf32>, vector<2x2xf32>, vector<32x2xf32> -> vector<32x2xf32>
      %36 = vector.extract_strided_slice %35 {offsets = [0, 0], sizes = [32, 1], strides = [1, 1]} : vector<32x2xf32> to vector<32x1xf32>
      %37 = vector.extract_strided_slice %35 {offsets = [0, 1], sizes = [32, 1], strides = [1, 1]} : vector<32x2xf32> to vector<32x1xf32>
      %38 = arith.addf %36, %37 : vector<32x1xf32>
      %39 = arith.negf %38 : vector<32x1xf32>
      %40 = math.exp %39 : vector<32x1xf32>
      %cst_26 = arith.constant 1.000000e+00 : f32
      %41 = vector.broadcast %cst_26 : f32 to vector<32x1xf32>
      %42 = arith.addf %41, %40 : vector<32x1xf32>
      %43 = arith.divf %41, %42 : vector<32x1xf32>
      %44 = tpu.iota {dimensions = array<i32: 0>} : vector<32x32xi32>
      %45 = tpu.iota {dimensions = array<i32: 1>} : vector<32x32xi32>
      %46 = arith.cmpi eq, %44, %45 : vector<32x32xi32>
      %cst_27 = arith.constant 0.000000e+00 : f32
      %47 = vector.shape_cast %43 : vector<32x1xf32> to vector<32x1xf32>
      %48 = vector.broadcast %47 : vector<32x1xf32> to vector<32x32xf32>
      %49 = vector.broadcast %cst_27 : f32 to vector<32x32xf32>
      %50 = arith.select %46, %48, %49 : vector<32x32xi1>, vector<32x32xf32>
      %cst_28 = arith.constant dense<0.000000e+00> : vector<32xf32>
      %51 = vector.multi_reduction <add>, %50, %cst_28 [0] : vector<32x32xf32> to vector<32xf32>
      %52 = vector.shape_cast %51 : vector<32xf32> to vector<1x32xf32>
      %c0_29 = arith.constant 0 : index
      %c0_30 = arith.constant 0 : index
      %c0_31 = arith.constant 0 : index
      %53 = vector.load %arg5[%c0_29, %c0_30, %c0_31] : memref<1x1x32xf32, #tpu.memory_space<vmem>>, vector<1x1x32xf32>
      %54 = vector.shape_cast %53 : vector<1x1x32xf32> to vector<1x32xf32>
      %55 = vector.shape_cast %52 : vector<1x32xf32> to vector<1x1x32xf32>
      tpu.vector_store %arg5[%c0_29, %c0_30, %c0_31], %55 {strides = array<i32>} : memref<1x1x32xf32, #tpu.memory_space<vmem>>, vector<1x1x32xf32>,
    } else {
    }
    return
  }
  func.func @transform_0(%arg0: i32, %arg1: i32) -> (i32, i32, i32) {
    %c0_i32 = arith.constant 0 : i32
    %c0_i32_0 = arith.constant 0 : i32
    return %arg0, %c0_i32, %arg1 : i32, i32, i32
  }
  func.func @transform_1(%arg0: i32, %arg1: i32) -> (i32, i32) {
    %c0_i32 = arith.constant 0 : i32
    %c0_i32_0 = arith.constant 0 : i32
    %c0_i32_1 = arith.constant 0 : i32
    return %c0_i32, %c0_i32_0 : i32, i32
  }
  func.func @transform_2(%arg0: i32, %arg1: i32) -> (i32, i32) {
    %c0_i32 = arith.constant 0 : i32
    %c0_i32_0 = arith.constant 0 : i32
    %c0_i32_1 = arith.constant 0 : i32
    return %c0_i32, %c0_i32_0 : i32, i32
  }
  func.func @transform_3(%arg0: i32, %arg1: i32) -> (i32, i32, i32) {
    %c0_i32 = arith.constant 0 : i32
    %c0_i32_0 = arith.constant 0 : i32
    %c0_i32_1 = arith.constant 0 : i32
    return %arg0, %c0_i32, %c0_i32_0 : i32, i32, i32
  }
}

</mosaic_0001>

<llo_original>
// kernel: tpu_custom_call.1
$region0: #{tpu_custom_call.1}
  #allocation0 [shape = 'u32[]', space=smem, size = 0x4, offset = 0x4, fixed_abs, tag = 'smem constant byte address 0x4 - core index']
  #allocation1 [shape = 'u32[144,128]{1,0:T(1,128)}', space=vmem, size = 0x12000, scoped, tag = 'internal scratch']
  #allocation2 [shape = 'f32[32,1]{1,0:T(8,128)}', space=vmem, size = 0x4000, scoped, tag = 'scratch operand']
  #allocation3 [shape = 'f32[32,1]{1,0:T(8,128)}', space=vmem, size = 0x4000, scoped, tag = 'scratch operand']
  %s0 = inlined_call_operand.hbm [shape: f32[2,32,256], index: 0, kind: input, shape index: {}]
  %s1 = inlined_call_operand.vmem [shape: f32[2,32], index: 1, kind: input, shape index: {}]
  %s2 = inlined_call_operand.vmem [shape: f32[32,2], index: 2, kind: input, shape index: {}]
  %s3 = inlined_call_operand.hbm [shape: f32[2,1,32], index: 3, kind: output, shape index: {}]
  %s4 = sld [smem:[#allocation0]]
  $region57: #{tpu_custom_call.1} parent=0
    _
  %s6 = ssub.s32 1, %s4
  %s7 = scalar_select 0, %s6, %s4
  $region1: #{tpu_custom_call.1} parent=0
    #allocation4 [shape = 'u8[32768]{0}', space=vmem, size = 0x8000, scoped, tag = 'input window, operand 0']
    #allocation5 [shape = 's32[2]{0}', space=sflag, size = 0x8, scoped, tag = 'scoped memory for tpu_custom_call.1']
    #allocation6 [shape = 's32[2]{0}', space=sflag, size = 0x8, scoped, tag = 'scoped memory for tpu_custom_call.1']
    #allocation7 [shape = 'u8[1024]{0}', space=vmem, size = 0x400, scoped, tag = 'output window, operand 0']
    %8 = vsyncpa [#allocation5], 0
    %s9 = scalar_lea.sflag [#allocation5], 1
    %10 = vsyncpa %s9, 0
    %11 = vsyncpa [#allocation6], 0
    %s12 = scalar_lea.sflag [#allocation6], 1
    %13 = vsyncpa %s12, 0
    loop: start=0, step=1, limit=6
    $region2: #{tpu_custom_call.1} parent=1 // loop_pre_header
      _
    $region3: #{tpu_custom_call.1} parent=1 // loop_header
      %s15 = sphi 0, %s19
      %p16 = scmp.ge.s32.totalorder %s15, 6
      %s22 = sphi 0, %s34
      %s23 = sphi 0, %s30
      %s24 = sphi 0, %s22
      %s25 = sphi 0, %s23
      %s26 = sphi 0, %s24
      %s27 = sphi 0, %s25
      %s39 = sphi 0, %s41
      %s42 = sphi 0, %s39
      %s43 = sphi 0, %s42
      %s59 = sphi 0, %s43
      %s63 = sphi 0, %s63
      %s65 = sphi 0, %s63
      %s66 = sphi 0, %s65
      %s80 = sphi 0, %s66
      %s84 = sphi 0, %s84
      %s86 = sphi 0, %s84
      %s87 = sphi 0, %s86
      %s101 = sphi 0, %s87
      %s107 = sphi 0, %s109
      %s110 = sphi 0, %s107
      %s111 = sphi 0, %s110
      %s127 = sphi 0, %s111
    $region4: #{tpu_custom_call.1} parent=1 // loop_header_branch
      %18 = sbr.rel (%p16) target = $region8
    $region5: #{tpu_custom_call.1} parent=1 // loop_body
      %s20 = ssub.s32 %s15, 1
      %s21 = ssub.s32 %s15, 2
      %s28 = sadd.s32 1, %s23
      %p29 = scmp.ge.s32.totalorder %s28, 2
      %s30 = scalar_select %p29, 0, %s28
      %s31 = sadd.s32 1, %s22
      %s32 = scalar_select %p29, %s31, %s22
      %p33 = scmp.ge.s32.totalorder %s32, 2
      %s34 = scalar_select %p33, 0, %s32
      %s35 = ssub.s32 %s22, %s34
      %s36 = ssub.s32 %s23, %s30
      %s37 = sor.u32 %s35, %s36
      %p38 = scmp.eq.s32.totalorder %s37, 0
      %s40 = sadd.s32 %s39, 1
      %s41 = scalar_select %p38, %s39, %s40
      %p44 = pneg %p38
      %p45 = scmp.eq.s32.totalorder %s15, 3
      %p46 = por %p44, %p45
      %p47 = scmp.ne.s32.totalorder %s39, %s42
      %p48 = scmp.eq.s32.totalorder %s15, 0
      %p49 = por %p47, %p48
      %p50 = scmp.ne.s32.totalorder %s39, %s42
      %p51 = scmp.eq.s32.totalorder %s20, 3
      %p52 = por %p50, %p51
      %p53 = scmp.ne.s32.totalorder %s42, %s43
      %p54 = scmp.eq.s32.totalorder %s20, 0
      %p55 = por %p53, %p54
      %p56 = scmp.ne.s32.totalorder %s42, %s43
      %p57 = scmp.eq.s32.totalorder %s21, 3
      %p58 = por %p56, %p57
      %p60 = scmp.ne.s32.totalorder %s43, %s59
      %p61 = scmp.eq.s32.totalorder %s21, 0
      %p62 = por %p60, %p61
      %s64 = sadd.s32 %s63, 1
      %p67 = scmp.eq.s32.totalorder %s15, 3
      %p68 = scmp.ne.s32.totalorder %s63, %s65
      %p69 = scmp.eq.s32.totalorder %s15, 0
      %p70 = por %p68, %p69
      %p71 = scmp.ne.s32.totalorder %s63, %s65
      %p72 = scmp.eq.s32.totalorder %s20, 3
      %p73 = por %p71, %p72
      %p74 = scmp.ne.s32.totalorder %s65, %s66
      %p75 = scmp.eq.s32.totalorder %s20, 0
      %p76 = por %p74, %p75
      %p77 = scmp.ne.s32.totalorder %s65, %s66
      %p78 = scmp.eq.s32.totalorder %s21, 3
      %p79 = por %p77, %p78
      %p81 = scmp.ne.s32.totalorder %s66, %s80
      %p82 = scmp.eq.s32.totalorder %s21, 0
      %p83 = por %p81, %p82
      %s85 = sadd.s32 %s84, 1
      %p88 = scmp.eq.s32.totalorder %s15, 3
      %p89 = scmp.ne.s32.totalorder %s84, %s86
      %p90 = scmp.eq.s32.totalorder %s15, 0
      %p91 = por %p89, %p90
      %p92 = scmp.ne.s32.totalorder %s84, %s86
      %p93 = scmp.eq.s32.totalorder %s20, 3
      %p94 = por %p92, %p93
      %p95 = scmp.ne.s32.totalorder %s86, %s87
      %p96 = scmp.eq.s32.totalorder %s20, 0
      %p97 = por %p95, %p96
      %p98 = scmp.ne.s32.totalorder %s86, %s87
      %p99 = scmp.eq.s32.totalorder %s21, 3
      %p100 = por %p98, %p99
      %p102 = scmp.ne.s32.totalorder %s87, %s101
      %p103 = scmp.eq.s32.totalorder %s21, 0
      %p104 = por %p102, %p103
      %s105 = ssub.s32 %s22, %s34
      %p106 = scmp.eq.s32.totalorder %s105, 0
      %s108 = sadd.s32 %s107, 1
      %s109 = scalar_select %p106, %s107, %s108
      %p112 = pneg %p106
      %p113 = scmp.eq.s32.totalorder %s15, 3
      %p114 = por %p112, %p113
      %p115 = scmp.ne.s32.totalorder %s107, %s110
      %p116 = scmp.eq.s32.totalorder %s15, 0
      %p117 = por %p115, %p116
      %p118 = scmp.ne.s32.totalorder %s107, %s110
      %p119 = scmp.eq.s32.totalorder %s20, 3
      %p120 = por %p118, %p119
      %p121 = scmp.ne.s32.totalorder %s110, %s111
      %p122 = scmp.eq.s32.totalorder %s20, 0
      %p123 = por %p121, %p122
      %p124 = scmp.ne.s32.totalorder %s110, %s111
      %p125 = scmp.eq.s32.totalorder %s21, 3
      %p126 = por %p124, %p125
      %p128 = scmp.ne.s32.totalorder %s111, %s127
      %p129 = scmp.eq.s32.totalorder %s21, 0
      %p130 = por %p128, %p129
      %p131 = scmp.le.s32.totalorder 1, %s15
      %p132 = scmp.lt.s32.totalorder %s15, 5
      %p133 = pnand %p131, %p132
      %p134 = pneg %p133
      // Predicated region
      $region9: #{tpu_custom_call.1} parent=5 // pred_check
        _
      $region10: #{tpu_custom_call.1} parent=5 // pred_check_branch
        %136 = sbr.rel (%p133) target = $region12
      $region11: #{tpu_custom_call.1} parent=5 // pred_region
        %s137 = ssub.s32 %s15, 1
        // Predicated region
        $region13: #{tpu_custom_call.1} parent=11 // pred_check
          %p138 = pneg %p76
        $region14: #{tpu_custom_call.1} parent=11 // pred_check_branch
          %140 = sbr.rel (%p138) target = $region16
        $region15: #{tpu_custom_call.1} parent=11 // pred_region
          _
        $region16: #{tpu_custom_call.1} parent=11 // pred_fallthru
          _
        // Predicated region
        $region17: #{tpu_custom_call.1} parent=11 // pred_check
          %p141 = pneg %p97
        $region18: #{tpu_custom_call.1} parent=11 // pred_check_branch
          %143 = sbr.rel (%p141) target = $region20
        $region19: #{tpu_custom_call.1} parent=11 // pred_region
          _
        $region20: #{tpu_custom_call.1} parent=11 // pred_fallthru
          _
      $region12: #{tpu_custom_call.1} parent=5 // pred_fallthru
        _
      %p144 = scmp.lt.s32.totalorder %s15, 4
      // Predicated region
      $region21: #{tpu_custom_call.1} parent=5 // pred_check
        %p145 = pneg %p144
      $region22: #{tpu_custom_call.1} parent=5 // pred_check_branch
        %147 = sbr.rel (%p145) target = $region24
      $region23: #{tpu_custom_call.1} parent=5 // pred_region
        // Predicated region
        $region25: #{tpu_custom_call.1} parent=23 // pred_check
          %p148 = pneg %p49
        $region26: #{tpu_custom_call.1} parent=23 // pred_check_branch
          %150 = sbr.rel (%p148) target = $region28
        $region27: #{tpu_custom_call.1} parent=23 // pred_region
          %s151 = sand.u32 %s39, 1
          %s152 = scalar_lea.sflag [#allocation5], %s151
          %s153 = sand.u32 %s39, 1
          %s154 = smul.addr %s153, 32
          %s155 = scalar_lea.vmem [#allocation4], %s154
          %s157 = ssub.s32 512, 512
          %158 = vsyncadd %s152, %s157
          %s159 = smul.addr %s22, 8
          %s160 = sadd.s32 %s23, %s159
          %s161 = smul.addr %s160, 128
          %s162 = scalar_lea.hbm %s0, %s161
          %s163 = sshll.u32 %s155, 4
          %s164 = int_to_ptr.vmem [resolvable:$true] %s163
          %169 = dma.hbm_to_vmem [thread:$0]  %s162, 512, %s164, %s152, 256, 128, 8
        $region28: #{tpu_custom_call.1} parent=23 // pred_fallthru
          _
      $region24: #{tpu_custom_call.1} parent=5 // pred_fallthru
        _
      %p170 = scmp.le.s32.totalorder 1, %s15
      %p171 = scmp.lt.s32.totalorder %s15, 5
      %p172 = pnand %p170, %p171
      %p173 = pneg %p172
      // Predicated region
      $region29: #{tpu_custom_call.1} parent=5 // pred_check
        _
      $region30: #{tpu_custom_call.1} parent=5 // pred_check_branch
        %175 = sbr.rel (%p172) target = $region32
      $region31: #{tpu_custom_call.1} parent=5 // pred_region
        %s176 = ssub.s32 %s15, 1
        %s177 = sand.u32 %s42, 1
        %s178 = scalar_lea.sflag [#allocation5], %s177
        %s179 = sand.u32 %s42, 1
        %s180 = smul.addr %s179, 32
        %s181 = scalar_lea.vmem [#allocation4], %s180
        // Predicated region
        $region33: #{tpu_custom_call.1} parent=31 // pred_check
          %p182 = pneg %p55
        $region34: #{tpu_custom_call.1} parent=31 // pred_check_branch
          %184 = sbr.rel (%p182) target = $region36
        $region35: #{tpu_custom_call.1} parent=31 // pred_region
          %185 = dma.done %s178, 512
        $region36: #{tpu_custom_call.1} parent=31 // pred_fallthru
          _
        %s186 = sand.u32 %s42, 1
        %s187 = scalar_lea.sflag [#allocation5], %s186
        %s188 = sand.u32 %s42, 1
        %s189 = smul.addr %s188, 32
        %s190 = scalar_lea.vmem [#allocation4], %s189
        %p191 = pneg %p55
        %p192 = pneg %p52
        %p193 = pneg %p76
        %p194 = pneg %p73
        %p195 = pneg %p97
        %p196 = pneg %p94
        %p197 = pneg %p123
        %p198 = pneg %p120
        %s199 = sand.u32 %s110, 1
        %s200 = scalar_lea.sflag [#allocation6], %s199
        %s201 = sand.u32 %s110, 1
        %s202 = scalar_lea.vmem [#allocation7], %s201
        %p203 = scmp.eq.s32.totalorder %s25, 0
        // Predicated region
        $region37: #{tpu_custom_call.1} parent=31 // pred_check
          %p204 = pneg %p203
        $region38: #{tpu_custom_call.1} parent=31 // pred_check_branch
          %206 = sbr.rel (%p204) target = $region40
        $region39: #{tpu_custom_call.1} parent=31 // pred_region
          %vm207 = vcmask 7168
          %208 = vst.msk [vmem:[#allocation2] sm:$0xff] %vm207, 0.0
          %209 = vst.msk [vmem:[#allocation2 + $0x8] sm:$0xff] %vm207, 0.0
          %210 = vst.msk [vmem:[#allocation2 + $0x10] sm:$0xff] %vm207, 0.0
          %211 = vst.msk [vmem:[#allocation2 + $0x18] sm:$0xff] %vm207, 0.0
          %212 = vst.msk [vmem:[#allocation3] sm:$0xff] %vm207, -inf
          %213 = vst.msk [vmem:[#allocation3 + $0x8] sm:$0xff] %vm207, -inf
          %214 = vst.msk [vmem:[#allocation3 + $0x10] sm:$0xff] %vm207, -inf
          %215 = vst.msk [vmem:[#allocation3 + $0x18] sm:$0xff] %vm207, -inf
        $region40: #{tpu_custom_call.1} parent=31 // pred_fallthru
          _
        %v216 = vld [vmem:[%s181] sm:$0xff]
        %v217 = vld [vmem:[%s181 + $0x8] sm:$0xff]
        %v218 = vld [vmem:[%s181 + $0x10] sm:$0xff]
        %v219 = vld [vmem:[%s181 + $0x18] sm:$0xff]
        %v220 = vld [vmem:[#allocation2] sm:$0xff]
        %v221 = vld [vmem:[#allocation2 + $0x8] sm:$0xff]
        %v222 = vld [vmem:[#allocation2 + $0x10] sm:$0xff]
        %v223 = vld [vmem:[#allocation2 + $0x18] sm:$0xff]
        %224 = vadd.xlane.f32.xlu0 %v216
        %v225 = vpop.xlane.xlu0 %224
        %226 = vadd.xlane.f32.xlu0 %v217
        %v227 = vpop.xlane.xlu0 %226
        %228 = vadd.xlane.f32.xlu0 %v218
        %v229 = vpop.xlane.xlu0 %228
        %230 = vadd.xlane.f32.xlu0 %v219
        %v231 = vpop.xlane.xlu0 %230
        %v232 = vadd.f32 %v220, %v225
        %v233 = vadd.f32 %v221, %v227
        %v234 = vadd.f32 %v222, %v229
        %v235 = vadd.f32 %v223, %v231
        %vm236 = vcmask 7168
        %237 = vst.msk [vmem:[#allocation2] sm:$0xff] %vm236, %v232
        %238 = vst.msk [vmem:[#allocation2 + $0x8] sm:$0xff] %vm236, %v233
        %239 = vst.msk [vmem:[#allocation2 + $0x10] sm:$0xff] %vm236, %v234
        %240 = vst.msk [vmem:[#allocation2 + $0x18] sm:$0xff] %vm236, %v235
        %v241 = vld [vmem:[#allocation3] sm:$0xff]
        %v242 = vld [vmem:[#allocation3 + $0x8] sm:$0xff]
        %v243 = vld [vmem:[#allocation3 + $0x10] sm:$0xff]
        %v244 = vld [vmem:[#allocation3 + $0x18] sm:$0xff]
        %245 = vmax.xlane.f32.xlu0 %v216
        %v246 = vpop.xlane.xlu0 %245
        %247 = vmax.xlane.f32.xlu0 %v217
        %v248 = vpop.xlane.xlu0 %247
        %249 = vmax.xlane.f32.xlu0 %v218
        %v250 = vpop.xlane.xlu0 %249
        %251 = vmax.xlane.f32.xlu0 %v219
        %v252 = vpop.xlane.xlu0 %251
        %v253 = vmax.f32 %v241, %v246
        %v254 = vmax.f32 %v242, %v248
        %v255 = vmax.f32 %v243, %v250
        %v256 = vmax.f32 %v244, %v252
        %257 = vst.msk [vmem:[#allocation3] sm:$0xff] %vm236, %v253
        %258 = vst.msk [vmem:[#allocation3 + $0x8] sm:$0xff] %vm236, %v254
        %259 = vst.msk [vmem:[#allocation3 + $0x10] sm:$0xff] %vm236, %v255
        %260 = vst.msk [vmem:[#allocation3 + $0x18] sm:$0xff] %vm236, %v256
        %p261 = scmp.eq.s32.totalorder %s25, 1
        // Predicated region
        $region41: #{tpu_custom_call.1} parent=31 // pred_check
          %p262 = pneg %p261
        $region42: #{tpu_custom_call.1} parent=31 // pred_check_branch
          %264 = sbr.rel (%p262) target = $region44
        $region43: #{tpu_custom_call.1} parent=31 // pred_region
          %v265 = vld [vmem:[#allocation2] sm:$0xff]
          %v266 = vld [vmem:[#allocation2 + $0x8] sm:$0xff]
          %v267 = vld [vmem:[#allocation2 + $0x10] sm:$0xff]
          %v268 = vld [vmem:[#allocation2 + $0x18] sm:$0xff]
          %v269 = vmul.f32 %v265, 0.00390625
          %v270 = vmul.f32 %v266, 0.00390625
          %v271 = vmul.f32 %v267, 0.00390625
          %v272 = vmul.f32 %v268, 0.00390625
          %v273 = vld [vmem:[#allocation3] sm:$0xff]
          %v274 = vld [vmem:[#allocation3 + $0x8] sm:$0xff]
          %v275 = vld [vmem:[#allocation3 + $0x10] sm:$0xff]
          %v276 = vld [vmem:[#allocation3 + $0x18] sm:$0xff]
          %v277 = vlaneseq
          %v278 = vand.u32 %v277, 127
          %vm279 = vcmp.eq.s32.totalorder %v278, 0
          %281 = vset.pattern.permute.xlu0 0
          %282 = vperm.xlu0 %281, %v269
          %v283 = vpop.permute.xlu0 %282
          %286 = vset.pattern.permute.xlu0 0
          %287 = vperm.xlu0 %286, %v270
          %v288 = vpop.permute.xlu0 %287
          %291 = vset.pattern.permute.xlu0 0
          %292 = vperm.xlu0 %291, %v271
          %v293 = vpop.permute.xlu0 %292
          %296 = vset.pattern.permute.xlu0 0
          %297 = vperm.xlu0 %296, %v272
          %v298 = vpop.permute.xlu0 %297
          %301 = vset.pattern.permute.xlu0 0
          %302 = vperm.xlu0 %301, %v273
          %v303 = vpop.permute.xlu0 %302
          %306 = vset.pattern.permute.xlu0 0
          %307 = vperm.xlu0 %306, %v274
          %v308 = vpop.permute.xlu0 %307
          %311 = vset.pattern.permute.xlu0 0
          %312 = vperm.xlu0 %311, %v275
          %v313 = vpop.permute.xlu0 %312
          %316 = vset.pattern.permute.xlu0 0
          %317 = vperm.xlu0 %316, %v276
          %v318 = vpop.permute.xlu0 %317
          %v320 = vsel %vm279, %v283, %v303
          %v321 = vsel %vm279, %v288, %v308
          %v322 = vsel %vm279, %v293, %v313
          %v323 = vsel %vm279, %v298, %v318
          %v324 = vld [vmem:[%s1] sm:$0x3]
          %v325 = vld [vmem:[%s2] sm:$0xff]
          %v326 = vld [vmem:[%s2 + $0x8] sm:$0xff]
          %v327 = vld [vmem:[%s2 + $0x10] sm:$0xff]
          %v328 = vld [vmem:[%s2 + $0x18] sm:$0xff]
          %vm329 = vcmask 261120
          %v331 = vsel %vm329, %v324, 0
          %333 = vmatprep.subr.mxu0 0.0
          %334 = vmatpush1.msra.mxu0 %v320
          %335 = vmatprep.subr.mxu0 0.0
          %336 = vmatpush1.msra.mxu0 %v321
          %337 = vmatprep.subr.mxu0 0.0
          %338 = vmatpush1.msra.mxu0 %v322
          %339 = vmatprep.subr.mxu0 0.0
          %340 = vmatpush1.msra.mxu0 %v323
          %341 = vmatprep.subr.mxu0 0.0
          %342 = vmatpush1.msra.mxu0 0.0
          %343 = vmatprep.subr.mxu0 0.0
          %344 = vmatpush1.msra.mxu0 0.0
          %345 = vmatprep.subr.mxu0 0.0
          %346 = vmatpush1.msra.mxu0 0.0
          %347 = vmatprep.subr.mxu0 0.0
          %348 = vmatpush1.msra.mxu0 0.0
          %349 = vmatprep.subr.mxu0 0.0
          %350 = vmatpush1.msra.mxu0 0.0
          %351 = vmatprep.subr.mxu0 0.0
          %352 = vmatpush1.msra.mxu0 0.0
          %353 = vmatprep.subr.mxu0 0.0
          %354 = vmatpush1.msra.mxu0 0.0
          %355 = vmatprep.subr.mxu0 0.0
          %356 = vmatpush1.msra.mxu0 0.0
          %357 = vmatprep.subr.mxu0 0.0
          %358 = vmatpush1.msra.mxu0 0.0
          %359 = vmatprep.subr.mxu0 0.0
          %360 = vmatpush1.msra.mxu0 0.0
          %361 = vmatprep.subr.mxu0 0.0
          %362 = vmatpush1.msra.mxu0 0.0
          %363 = vmatprep.subr.mxu0 0.0
          %364 = vmatpush1.msra.mxu0 0.0
          %365 = vmatprep.subr.mxu0 0.0
          %366 = vmatpush1.msra.mxu0 0.0
          %367 = vmatprep.subr.mxu0 0.0
          %368 = vmatpush1.msra.mxu0 0.0
          %369 = vmatprep.subr.mxu0 0.0
          %370 = vmatpush1.msra.mxu0 0.0
          %371 = vmatprep.subr.mxu0 0.0
          %372 = vmatpush1.msra.mxu0 0.0
          %373 = vmatprep.subr.mxu0 0.0
          %374 = vmatpush1.msra.mxu0 0.0
          %375 = vmatprep.subr.mxu0 0.0
          %376 = vmatpush1.msra.mxu0 0.0
          %377 = vmatprep.subr.mxu0 0.0
          %378 = vmatpush1.msra.mxu0 0.0
          %379 = vmatprep.subr.mxu0 0.0
          %380 = vmatpush1.msra.mxu0 0.0
          %381 = vmatprep.subr.mxu0 0.0
          %382 = vmatpush1.msra.mxu0 0.0
          %383 = vmatprep.subr.mxu0 0.0
          %384 = vmatpush1.msra.mxu0 0.0
          %385 = vmatprep.subr.mxu0 0.0
          %386 = vmatpush1.msra.mxu0 0.0
          %387 = vmatprep.subr.mxu0 0.0
          %388 = vmatpush1.msra.mxu0 0.0
          %389 = vmatprep.subr.mxu0 0.0
          %390 = vmatpush1.msra.mxu0 0.0
          %391 = vmatprep.subr.mxu0 0.0
          %392 = vmatpush1.msra.mxu0 0.0
          %393 = vmatprep.subr.mxu0 0.0
          %394 = vmatpush1.msra.mxu0 0.0
          %395 = vmatprep.subr.mxu0 0.0
          %396 = vmatpush1.msra.mxu0 0.0
          %397 = vmatprep.mubr.f32.mxu0 0.0
          %398 = vmatmul.mubr.f32.gmra.mrb[0].mxu0 %v331
          %v399 = vpop.f32.mrb[0].mxu0
          %v400 = vadd.f32 0.0, %v399
          %v401 = vpop.f32.mrb[0].mxu0
          %402 = vdwg.mxu0
          %v403 = vmax.f32 %v400, 0.0
          %vm404 = vcmask 15360
          %v406 = vsel %vm404, %v325, 0
          %v409 = vsel %vm404, %v326, 0
          %v412 = vsel %vm404, %v327, 0
          %v415 = vsel %vm404, %v328, 0
          %vm417 = vcmask 1041408
          %v419 = vsel %vm417, %v403, 0
          %421 = vmatprep.subr.mxu0 0.0
          %422 = vmatpush1.msra.mxu0 %v419
          %423 = vmatprep.subr.mxu0 0.0
          %424 = vmatpush1.msra.mxu0 0.0
          %425 = vmatprep.subr.mxu0 0.0
          %426 = vmatpush1.msra.mxu0 0.0
          %427 = vmatprep.subr.mxu0 0.0
          %428 = vmatpush1.msra.mxu0 0.0
          %429 = vmatprep.subr.mxu0 0.0
          %430 = vmatpush1.msra.mxu0 0.0
          %431 = vmatprep.subr.mxu0 0.0
          %432 = vmatpush1.msra.mxu0 0.0
          %433 = vmatprep.subr.mxu0 0.0
          %434 = vmatpush1.msra.mxu0 0.0
          %435 = vmatprep.subr.mxu0 0.0
          %436 = vmatpush1.msra.mxu0 0.0
          %437 = vmatprep.subr.mxu0 0.0
          %438 = vmatpush1.msra.mxu0 0.0
          %439 = vmatprep.subr.mxu0 0.0
          %440 = vmatpush1.msra.mxu0 0.0
          %441 = vmatprep.subr.mxu0 0.0
          %442 = vmatpush1.msra.mxu0 0.0
          %443 = vmatprep.subr.mxu0 0.0
          %444 = vmatpush1.msra.mxu0 0.0
          %445 = vmatprep.subr.mxu0 0.0
          %446 = vmatpush1.msra.mxu0 0.0
          %447 = vmatprep.subr.mxu0 0.0
          %448 = vmatpush1.msra.mxu0 0.0
          %449 = vmatprep.subr.mxu0 0.0
          %450 = vmatpush1.msra.mxu0 0.0
          %451 = vmatprep.subr.mxu0 0.0
          %452 = vmatpush1.msra.mxu0 0.0
          %453 = vmatprep.subr.mxu0 0.0
          %454 = vmatpush1.msra.mxu0 0.0
          %455 = vmatprep.subr.mxu0 0.0
          %456 = vmatpush1.msra.mxu0 0.0
          %457 = vmatprep.subr.mxu0 0.0
          %458 = vmatpush1.msra.mxu0 0.0
          %459 = vmatprep.subr.mxu0 0.0
          %460 = vmatpush1.msra.mxu0 0.0
          %461 = vmatprep.subr.mxu0 0.0
          %462 = vmatpush1.msra.mxu0 0.0
          %463 = vmatprep.subr.mxu0 0.0
          %464 = vmatpush1.msra.mxu0 0.0
          %465 = vmatprep.subr.mxu0 0.0
          %466 = vmatpush1.msra.mxu0 0.0
          %467 = vmatprep.subr.mxu0 0.0
          %468 = vmatpush1.msra.mxu0 0.0
          %469 = vmatprep.subr.mxu0 0.0
          %470 = vmatpush1.msra.mxu0 0.0
          %471 = vmatprep.subr.mxu0 0.0
          %472 = vmatpush1.msra.mxu0 0.0
          %473 = vmatprep.subr.mxu0 0.0
          %474 = vmatpush1.msra.mxu0 0.0
          %475 = vmatprep.subr.mxu0 0.0
          %476 = vmatpush1.msra.mxu0 0.0
          %477 = vmatprep.subr.mxu0 0.0
          %478 = vmatpush1.msra.mxu0 0.0
          %479 = vmatprep.subr.mxu0 0.0
          %480 = vmatpush1.msra.mxu0 0.0
          %481 = vmatprep.subr.mxu0 0.0
          %482 = vmatpush1.msra.mxu0 0.0
          %483 = vmatprep.subr.mxu0 0.0
          %484 = vmatpush1.msra.mxu0 0.0
          %485 = vmatprep.mubr.f32.mxu0 0.0
          %486 = vmatmul.mubr.f32.gmra.mrb[0].mxu0 %v406
          %v487 = vpop.f32.mrb[0].mxu0
          %v488 = vadd.f32 0.0, %v487
          %v489 = vpop.f32.mrb[0].mxu0
          %490 = vmatprep.mubr.f32.mxu0 0.0
          %491 = vmatmul.mubr.f32.gmra.mrb[0].mxu0 %v409
          %v492 = vpop.f32.mrb[0].mxu0
          %v493 = vadd.f32 0.0, %v492
          %v494 = vpop.f32.mrb[0].mxu0
          %495 = vmatprep.mubr.f32.mxu0 0.0
          %496 = vmatmul.mubr.f32.gmra.mrb[0].mxu0 %v412
          %v497 = vpop.f32.mrb[0].mxu0
          %v498 = vadd.f32 0.0, %v497
          %v499 = vpop.f32.mrb[0].mxu0
          %500 = vmatprep.mubr.f32.mxu0 0.0
          %501 = vmatmul.mubr.f32.gmra.mrb[0].mxu0 %v415
          %v502 = vpop.f32.mrb[0].mxu0
          %v503 = vadd.f32 0.0, %v502
          %v504 = vpop.f32.mrb[0].mxu0
          %505 = vdwg.mxu0
          %510 = vrot.lane.b32.xlu0 %v488, 127
          %v511 = vpop.permute.xlu0 %510
          %512 = vrot.lane.b32.xlu0 %v493, 127
          %v513 = vpop.permute.xlu0 %512
          %514 = vrot.lane.b32.xlu0 %v498, 127
          %v515 = vpop.permute.xlu0 %514
          %516 = vrot.lane.b32.xlu0 %v503, 127
          %v517 = vpop.permute.xlu0 %516
          %v522 = vadd.f32 %v488, %v511
          %v523 = vadd.f32 %v493, %v513
          %v524 = vadd.f32 %v498, %v515
          %v525 = vadd.f32 %v503, %v517
          %v526 = vxor.u32 %v522, 2147483648
          %v527 = vxor.u32 %v523, 2147483648
          %v528 = vxor.u32 %v524, 2147483648
          %v529 = vxor.u32 %v525, 2147483648
          %v530 = vmul.f32 %v526, 1.442695
          %v531 = vpow.pop %v530
          %v532 = vmul.f32 %v527, 1.442695
          %v533 = vpow.pop %v532
          %v534 = vmul.f32 %v528, 1.442695
          %v535 = vpow.pop %v534
          %v536 = vmul.f32 %v529, 1.442695
          %v537 = vpow.pop %v536
          %v538 = vadd.f32 %v531, 1.0
          %v539 = vadd.f32 %v533, 1.0
          %v540 = vadd.f32 %v535, 1.0
          %v541 = vadd.f32 %v537, 1.0
          %v542 = vrcp.pop %v538
          %v543 = vmul.f32 1.0, %v542
          %v544 = vrcp.pop %v539
          %v545 = vmul.f32 1.0, %v544
          %v546 = vrcp.pop %v540
          %v547 = vmul.f32 1.0, %v546
          %v548 = vrcp.pop %v541
          %v549 = vmul.f32 1.0, %v548
          %v550 = vlaneseq
          %v551 = vshrl.u32 %v550, 7
          %v552 = vadd.s32 %v551, 8
          %v553 = vadd.s32 %v551, 16
          %v554 = vadd.s32 %v551, 24
          %vm555 = vcmp.eq.s32.totalorder %v551, %v278
          %vm556 = vcmp.eq.s32.totalorder %v552, %v278
          %vm557 = vcmp.eq.s32.totalorder %v553, %v278
          %vm558 = vcmp.eq.s32.totalorder %v554, %v278
          %560 = vset.pattern.permute.xlu0 0
          %561 = vperm.xlu0 %560, %v543
          %v562 = vpop.permute.xlu0 %561
          %565 = vset.pattern.permute.xlu0 0
          %566 = vperm.xlu0 %565, %v545
          %v567 = vpop.permute.xlu0 %566
          %570 = vset.pattern.permute.xlu0 0
          %571 = vperm.xlu0 %570, %v547
          %v572 = vpop.permute.xlu0 %571
          %575 = vset.pattern.permute.xlu0 0
          %576 = vperm.xlu0 %575, %v549
          %v577 = vpop.permute.xlu0 %576
          %v579 = vsel %vm555, %v562, 0.0
          %v580 = vsel %vm556, %v567, 0.0
          %v581 = vsel %vm557, %v572, 0.0
          %v582 = vsel %vm558, %v577, 0.0
          %v583 = vsel %vm329, %v579, 0.0
          %v584 = vsel %vm329, %v580, 0.0
          %v585 = vadd.f32 %v583, %v584
          %v586 = vsel %vm329, %v581, 0.0
          %v587 = vadd.f32 %v585, %v586
          %v588 = vsel %vm329, %v582, 0.0
          %v589 = vadd.f32 %v587, %v588
          %v590 = vrot.slane %v589, 4
          %v591 = vadd.f32 %v589, %v590
          %v592 = vrot.slane %v591, 2
          %v593 = vadd.f32 %v591, %v592
          %v594 = vrot.slane %v593, 1
          %v595 = vadd.f32 %v593, %v594
          %vm596 = vcmask 253952
          %597 = vst.msk [vmem:[%s202] sm:$0x1] %vm596, %v595
        $region44: #{tpu_custom_call.1} parent=31 // pred_fallthru
          _
        %s598 = sand.u32 %s110, 1
        %s599 = scalar_lea.sflag [#allocation6], %s598
        %s600 = sand.u32 %s110, 1
        %s601 = scalar_lea.vmem [#allocation7], %s600
        // Predicated region
        $region45: #{tpu_custom_call.1} parent=31 // pred_check
          %p602 = pneg %p120
        $region46: #{tpu_custom_call.1} parent=31 // pred_check_branch
          %604 = sbr.rel (%p602) target = $region48
        $region47: #{tpu_custom_call.1} parent=31 // pred_region
          %s606 = ssub.s32 16, 16
          %607 = vsyncadd %s599, %s606
          %s608 = smul.addr %s24, 16
          %s609 = scalar_lea.hbm %s3, %s608
          %s611 = sshll.u32 %s601, 4
          %s612 = int_to_ptr.vmem [resolvable:$true] %s611
          %614 = dma.vmem_to_hbm [thread:$0]  %s612, 16, %s609, %s599
        $region48: #{tpu_custom_call.1} parent=31 // pred_fallthru
          _
      $region32: #{tpu_custom_call.1} parent=5 // pred_fallthru
        _
      %p615 = scmp.le.s32.totalorder 2, %s15
      // Predicated region
      $region49: #{tpu_custom_call.1} parent=5 // pred_check
        %p616 = pneg %p615
      $region50: #{tpu_custom_call.1} parent=5 // pred_check_branch
        %618 = sbr.rel (%p616) target = $region52
      $region51: #{tpu_custom_call.1} parent=5 // pred_region
        %s619 = ssub.s32 %s15, 2
        // Predicated region
        $region53: #{tpu_custom_call.1} parent=51 // pred_check
          %p620 = pneg %p126
        $region54: #{tpu_custom_call.1} parent=51 // pred_check_branch
          %622 = sbr.rel (%p620) target = $region56
        $region55: #{tpu_custom_call.1} parent=51 // pred_region
          %s623 = sand.u32 %s111, 1
          %s624 = scalar_lea.sflag [#allocation6], %s623
          %s625 = sand.u32 %s111, 1
          %s626 = scalar_lea.vmem [#allocation7], %s625
          %627 = dma.done %s624, 16
        $region56: #{tpu_custom_call.1} parent=51 // pred_fallthru
          _
      $region52: #{tpu_custom_call.1} parent=5 // pred_fallthru
        _
    $region6: #{tpu_custom_call.1} parent=1 // loop_footer
      %s19 = sadd.s32 1, %s15
    $region7: #{tpu_custom_call.1} parent=1 // loop_footer_branch
      %14 = sbr.rel target = $region3
    $region8: #{tpu_custom_call.1} parent=1 // loop_exit
      _
    %628 = vsyncpa [#allocation5], 1
    %s629 = scalar_lea.sflag [#allocation5], 1
    %630 = vsyncpa %s629, 1
    %631 = vsyncpa [#allocation6], 1
    %s632 = scalar_lea.sflag [#allocation6], 1
    %633 = vsyncpa %s632, 1

</llo_original>
